<compile_context>
chip_gen: v7x
topology: tpu7x:2x2x1
jax: 0.10.0
libtpu: 0.0.40
codegen_flags: <defaults>
</compile_context>

<pallas_src>
import functools

import jax
import jax.numpy as jnp
from jax.experimental import pallas as pl
from jax.experimental.pallas import tpu as pltpu

_MIB = 1024 * 1024


def _round_up(x: int, m: int) -> int:
    return (x + m - 1) // m * m


def _vmem_budget_bytes() -> int:
    """Usable per-kernel VMEM budget for the current TPU generation."""
    cap = 64 * _MIB  # conservative default (v7x physical per-core VMEM)
    try:
        info = pltpu.get_tpu_info()
        cap = int(getattr(info, "vmem_capacity_bytes", cap) or cap)
    except Exception:
        pass
    # Leave ~16 MiB headroom for Mosaic-internal scratch:
    # v5e/v6e (128 MiB) -> 112 MiB, v7x (64 MiB) -> 48 MiB.
    return max(32 * _MIB, cap - 16 * _MIB)


# ----------------------------------------------------------------------------
# Fast path: whole (C, N) slab resident in VMEM, X read from HBM once.
# ----------------------------------------------------------------------------
def _cam_fused_kernel(gamma_ref, x_ref, o_ref, *, compute_dtype):
    x = x_ref[0]                                    # (C, N_pad), input dtype
    x_mx = x.astype(compute_dtype)                  # MXU operand (bf16 default)

    # energy = X @ X^T as an NT contraction over the spatial axis (the MXU
    # consumes the RHS directly; no materialised (N, C) transpose).
    energy = jax.lax.dot_general(
        x_mx, x_mx, dimension_numbers=(((1,), (1,)), ((), ())),
        preferred_element_type=jnp.float32)         # (C, C) f32

    # softmax(rowmax - E) == exp(rowmin - E) / sum: a single row reduction.
    row_min = jnp.min(energy, axis=-1, keepdims=True)
    p = jnp.exp(row_min - energy)
    attn = p / jnp.sum(p, axis=-1, keepdims=True)   # exact normalisation

    out = jnp.dot(attn.astype(compute_dtype), x_mx,
                  preferred_element_type=jnp.float32)
    gamma = gamma_ref[0]                            # SMEM scalar
    o_ref[0] = (gamma * out + x.astype(jnp.float32)).astype(o_ref.dtype)


# ----------------------------------------------------------------------------
# Fallback path: two-pass flash-style over grid (B, phase, N tile).
# ----------------------------------------------------------------------------
def _cam_two_pass_kernel(gamma_ref, x_ref, o_ref, acc_ref, attn_ref, *,
                         compute_dtype):
    phase = pl.program_id(1)
    n = pl.program_id(2)
    last_n = pl.num_programs(2) - 1

    x = x_ref[0]                                    # (C, tile_n), input dtype
    x_mx = x.astype(compute_dtype)

    @pl.when(phase == 0)
    def _accumulate_energy():
        @pl.when(n == 0)
        def _init():
            acc_ref[...] = jnp.zeros_like(acc_ref)

        # energy += X_n @ X_n^T (NT contraction; f32 accumulation on the MXU).
        acc_ref[...] += jax.lax.dot_general(
            x_mx, x_mx, dimension_numbers=(((1,), (1,)), ((), ())),
            preferred_element_type=jnp.float32)

        @pl.when(n == last_n)
        def _energy_to_attention():
            energy = acc_ref[...]                   # (C, C) f32
            row_min = jnp.min(energy, axis=-1, keepdims=True)
            p = jnp.exp(row_min - energy)
            # Cast the normalised attention to the MXU dtype exactly once;
            # phase 1 reads this cached copy every N tile.
            attn_ref[...] = (p / jnp.sum(p, axis=-1, keepdims=True)
                             ).astype(attn_ref.dtype)

    @pl.when(phase == 1)
    def _apply_attention():
        out = jnp.dot(attn_ref[...], x_mx, preferred_element_type=jnp.float32)
        gamma = gamma_ref[0]
        o_ref[0] = (gamma * out + x.astype(jnp.float32)).astype(o_ref.dtype)


# ----------------------------------------------------------------------------
# Wrapper
# ----------------------------------------------------------------------------
def cam_module_forward(x, gamma, *, compute_dtype=jnp.bfloat16, tile_n=None,
                       force_two_pass=False):
    """CAM_Module.forward. x: (B, C, H, W), gamma: scalar. Returns (B, C, H, W)."""
    B, C, H, W = x.shape
    N = H * W
    in_bytes = jnp.dtype(x.dtype).itemsize
    mx_bytes = jnp.dtype(compute_dtype).itemsize

    budget = _vmem_budget_bytes()
    n128 = _round_up(N, 128)

    gamma_arr = jnp.asarray(gamma, dtype=jnp.float32).reshape(1)
    x_flat = x.reshape(B, C, N)

    # Fast-path footprint per grid step: double-buffered input + output slabs,
    # the MXU-dtype copy, f32 matmul/residual temporaries, ~4 C^2 f32 softmax
    # intermediates.
    fused_need = C * n128 * (4 * in_bytes + mx_bytes + 8) + 16 * C * C
    use_fused = (not force_two_pass) and fused_need <= budget

    if use_fused:
        n_pad = n128
        x_in = x_flat if n_pad == N else jnp.pad(
            x_flat, ((0, 0), (0, 0), (0, n_pad - N)))
        kernel = functools.partial(_cam_fused_kernel, compute_dtype=compute_dtype)
        out_padded = pl.pallas_call(
            kernel,
            out_shape=jax.ShapeDtypeStruct((B, C, n_pad), x.dtype),
            grid_spec=pltpu.PrefetchScalarGridSpec(
                num_scalar_prefetch=1,                       # gamma -> SMEM
                grid=(B,),
                in_specs=[pl.BlockSpec((1, C, n_pad), lambda b, g: (b, 0, 0))],
                out_specs=pl.BlockSpec((1, C, n_pad), lambda b, g: (b, 0, 0)),
            ),
            compiler_params=pltpu.CompilerParams(
                dimension_semantics=("parallel",),
                vmem_limit_bytes=int(budget),
            ),
        )(gamma_arr, x_in)
    else:
        # Bytes per spatial column of a tile: 2x input + 2x output pipeline
        # buffers, MXU-dtype copy, f32 matmul output + residual temporaries.
        per_col = C * (4 * in_bytes + mx_bytes + 8)
        fixed = C * C * (8 + mx_bytes) + 2 * _MIB            # acc + attn + slack
        if tile_n is None:
            max_tile = max(128, ((budget - fixed) // per_col) // 128 * 128)
            max_tile = min(max_tile, n128)
            # Prefer tiles >= 1024 (per-step overhead, v5e store slot), then
            # pick the candidate minimising N-padding waste; tie-break largest.
            lo = min(1024, max_tile)
            tile_n = min(range(lo, max_tile + 1, 128),
                         key=lambda t: (_round_up(N, t), -t))
        else:
            tile_n = min(_round_up(tile_n, 128), n128)
        n_pad = _round_up(N, tile_n)
        num_tiles = n_pad // tile_n

        x_in = x_flat if n_pad == N else jnp.pad(
            x_flat, ((0, 0), (0, 0), (0, n_pad - N)))
        kernel = functools.partial(_cam_two_pass_kernel,
                                   compute_dtype=compute_dtype)
        out_padded = pl.pallas_call(
            kernel,
            out_shape=jax.ShapeDtypeStruct((B, C, n_pad), x.dtype),
            grid_spec=pltpu.PrefetchScalarGridSpec(
                num_scalar_prefetch=1,                       # gamma -> SMEM
                grid=(B, 2, num_tiles),                      # (batch, phase, n)
                in_specs=[pl.BlockSpec((1, C, tile_n),
                                       lambda b, p, n, g: (b, 0, n))],
                # Phase 0 parks the output window on tile 0; its block index is
                # unchanged until phase 1 / tile 0 writes real data, so the
                # single writeback of that block only happens after the write.
                out_specs=pl.BlockSpec((1, C, tile_n),
                                       lambda b, p, n, g: (b, 0, p * n)),
                scratch_shapes=[pltpu.VMEM((C, C), jnp.float32),   # energy acc
                                pltpu.VMEM((C, C), compute_dtype)],  # attn cache
            ),
            compiler_params=pltpu.CompilerParams(
                dimension_semantics=("parallel", "arbitrary", "arbitrary"),
                vmem_limit_bytes=int(budget),
            ),
        )(gamma_arr, x_in)

    out = out_padded if n_pad == N else out_padded[:, :, :N]
    return out.reshape(B, C, H, W)


def _reference(x, gamma, compute_dtype=jnp.float32):
    """PyTorch-semantics reference; compute_dtype sets matmul operand dtype."""
    B, C, H, W = x.shape
    xf = x.reshape(B, C, H * W).astype(jnp.float32)
    xm = xf.astype(compute_dtype)
    energy = jnp.einsum("bcn,bdn->bcd", xm, xm,
                        preferred_element_type=jnp.float32,
                        precision=jax.lax.Precision.HIGHEST)
    energy_new = jnp.max(energy, axis=-1, keepdims=True) - energy
    attn = jax.nn.softmax(energy_new, axis=-1)
    out = jnp.einsum("bcd,bdn->bcn", attn.astype(compute_dtype), xm,
                     preferred_element_type=jnp.float32,
                     precision=jax.lax.Precision.HIGHEST)
    return gamma * out.reshape(B, C, H, W) + x


if __name__ == "__main__":
    key = jax.random.PRNGKey(0)
    B, C, H, W = 2, 4, 16, 16
    x = jax.random.normal(key, (B, C, H, W), dtype=jnp.float32)

    # 1) Module default: nn.Parameter(torch.zeros(1)) -> gamma = 0, out == x.
    out0 = jax.block_until_ready(cam_module_forward(x, jnp.float32(0.0)))
    assert out0.shape == (B, C, H, W)
    assert jnp.allclose(out0, x, atol=1e-6, rtol=0.0)

    gamma = jnp.float32(0.5)
    ref_bf16 = _reference(x, gamma, compute_dtype=jnp.bfloat16)
    ref_f32 = _reference(x, gamma, compute_dtype=jnp.float32)

    # 2) Fast (resident-X, single-pass) path, bf16 MXU operands.
    out_fast = jax.block_until_ready(cam_module_forward(x, gamma))
    assert jnp.allclose(out_fast, ref_bf16, atol=2e-2, rtol=2e-2)

    # 3) Fast path with full-f32 MXU operands vs exact PyTorch semantics.
    out_f32 = jax.block_until_ready(
        cam_module_forward(x, gamma, compute_dtype=jnp.float32))
    assert jnp.allclose(out_f32, ref_f32, atol=2e-2, rtol=2e-2)

    # 4) Two-pass fallback path (forced, 2 N tiles) exercises the accumulator
    #    and the phase/parking structure used for large C*N.
    out_two = jax.block_until_ready(
        cam_module_forward(x, gamma, force_two_pass=True, tile_n=128))
    assert jnp.allclose(out_two, ref_bf16, atol=2e-2, rtol=2e-2)
    assert jnp.allclose(out_two, out_fast, atol=2e-2, rtol=2e-2)

    print("KERNEL_OK")
</pallas_src>

<mosaic_0001>
module attributes {stable_mosaic.version = 11 : i64} {
  func.func @_cam_fused_kernel(%arg0: i32, %arg1: memref<1xf32, #tpu.memory_space<smem>>, %arg2: memref<1x4x256xf32, #tpu.memory_space<vmem>>, %arg3: memref<1x4x256xf32, #tpu.memory_space<vmem>>) attributes {dimension_semantics = [#tpu.dimension_semantics<parallel>], iteration_bounds = array<i64: 2>, scalar_prefetch = 1 : i64, scratch_operands = 0 : i64, tpu.core_type = #tpu.core_type<tc>, window_params = [{transform_indices = @transform_0, window_bounds = array<i64: 1, 4, 256>}, {transform_indices = @transform_1, window_bounds = array<i64: 1, 4, 256>}]} {
    %c0 = arith.constant 0 : index
    %c0_0 = arith.constant 0 : index
    %c0_1 = arith.constant 0 : index
    %0 = vector.load %arg2[%c0, %c0_0, %c0_1] : memref<1x4x256xf32, #tpu.memory_space<vmem>>, vector<1x4x256xf32>
    %1 = vector.shape_cast %0 : vector<1x4x256xf32> to vector<4x256xf32>
    %2 = arith.truncf %1 : vector<4x256xf32> to vector<4x256xbf16>
    %cst = arith.constant dense<0.000000e+00> : vector<4x4xf32>
    %3 = tpu.matmul %2, %2, %cst {dimension_numbers = #tpu.dot_dimension_numbers<[1], [1], [0], [0], [0, 0, 1, 0], [], []>} : vector<4x256xbf16>, vector<4x256xbf16>, vector<4x4xf32> -> vector<4x4xf32>
    %cst_2 = arith.constant dense<0x7F800000> : vector<4xf32>
    %4 = vector.multi_reduction <minimumf>, %3, %cst_2 [1] : vector<4x4xf32> to vector<4xf32>
    %5 = vector.shape_cast %4 : vector<4xf32> to vector<4x1xf32>
    %6 = vector.broadcast %5 : vector<4x1xf32> to vector<4x4xf32>
    %7 = arith.subf %6, %3 : vector<4x4xf32>
    %8 = math.exp %7 : vector<4x4xf32>
    %cst_3 = arith.constant dense<0.000000e+00> : vector<4xf32>
    %9 = vector.multi_reduction <add>, %8, %cst_3 [1] : vector<4x4xf32> to vector<4xf32>
    %10 = vector.shape_cast %9 : vector<4xf32> to vector<4x1xf32>
    %11 = vector.broadcast %10 : vector<4x1xf32> to vector<4x4xf32>
    %12 = arith.divf %8, %11 : vector<4x4xf32>
    %13 = arith.truncf %12 : vector<4x4xf32> to vector<4x4xbf16>
    %cst_4 = arith.constant dense<0.000000e+00> : vector<4x256xf32>
    %14 = tpu.matmul %13, %2, %cst_4 {dimension_numbers = #tpu.dot_dimension_numbers<[1], [0], [0], [1], [0, 0, 1, 1], [], []>} : vector<4x4xbf16>, vector<4x256xbf16>, vector<4x256xf32> -> vector<4x256xf32>
    %c0_5 = arith.constant 0 : index
    %15 = memref.load %arg1[%c0_5] : memref<1xf32, #tpu.memory_space<smem>>
    %16 = vector.broadcast %15 : f32 to vector<4x256xf32>
    %17 = arith.mulf %16, %14 : vector<4x256xf32>
    %18 = arith.addf %17, %1 : vector<4x256xf32>
    %c0_6 = arith.constant 0 : index
    %c0_7 = arith.constant 0 : index
    %c0_8 = arith.constant 0 : index
    %19 = vector.load %arg3[%c0_6, %c0_7, %c0_8] : memref<1x4x256xf32, #tpu.memory_space<vmem>>, vector<1x4x256xf32>
    %20 = vector.shape_cast %19 : vector<1x4x256xf32> to vector<4x256xf32>
    %21 = vector.shape_cast %18 : vector<4x256xf32> to vector<1x4x256xf32>
    tpu.vector_store %arg3[%c0_6, %c0_7, %c0_8], %21 {strides = array<i32>} : memref<1x4x256xf32, #tpu.memory_space<vmem>>, vector<1x4x256xf32>,
    return
  }
  func.func @transform_0(%arg0: i32, %arg1: memref<1xf32, #tpu.memory_space<smem>>) -> (i32, i32, i32) {
    %c0_i32 = arith.constant 0 : i32
    %c0_i32_0 = arith.constant 0 : i32
    %c0_i32_1 = arith.constant 0 : i32
    return %arg0, %c0_i32, %c0_i32_0 : i32, i32, i32
  }
  func.func @transform_1(%arg0: i32, %arg1: memref<1xf32, #tpu.memory_space<smem>>) -> (i32, i32, i32) {
    %c0_i32 = arith.constant 0 : i32
    %c0_i32_0 = arith.constant 0 : i32
    %c0_i32_1 = arith.constant 0 : i32
    return %arg0, %c0_i32, %c0_i32_0 : i32, i32, i32
  }
}

</mosaic_0001>

<llo_original>
// kernel: tpu_custom_call.1
$region0: #{tpu_custom_call.1}
  #allocation0 [shape = 'u32[]', space=smem, size = 0x4, offset = 0x4, fixed_abs, tag = 'smem constant byte address 0x4 - core index']
  #allocation1 [shape = 'u32[144,128]{1,0:T(1,128)}', space=vmem, size = 0x12000, scoped, tag = 'internal scratch']
  #allocation2 [shape = 's32[1]{0}', space=sflag, size = 0x4, scoped, tag = 'scoped memory for tpu_custom_call.1']
  #allocation3 [shape = 'f32[1]{0:T(128)S(6)}', space=smem, size = 0x200, scoped, tag = 'prefetched SMEM operand 0']
  %s0 = inlined_call_operand.<no memory space> [shape: f32[1], index: 0, kind: input, shape index: {}]
  %s1 = inlined_call_operand.hbm [shape: f32[2,4,256], index: 1, kind: input, shape index: {}]
  %s2 = inlined_call_operand.hbm [shape: f32[2,4,256], index: 2, kind: output, shape index: {}]
  %s3 = sld [smem:[#allocation0]]
  $region41: #{tpu_custom_call.1} parent=0
    _
  %s5 = ssub.s32 1, %s3
  %s6 = scalar_select 0, %s5, %s3
  %7 = sst [smem:[#allocation3]] %s0
  $region1: #{tpu_custom_call.1} parent=0
    #allocation4 [shape = 'u8[8192]{0}', space=vmem, size = 0x2000, scoped, tag = 'input window, operand 1']
    #allocation5 [shape = 's32[2]{0}', space=sflag, size = 0x8, scoped, tag = 'scoped memory for tpu_custom_call.1']
    #allocation6 [shape = 's32[2]{0}', space=sflag, size = 0x8, scoped, tag = 'scoped memory for tpu_custom_call.1']
    #allocation7 [shape = 'u8[8192]{0}', space=vmem, size = 0x2000, scoped, tag = 'output window, operand 0']
    %8 = vsyncpa [#allocation5], 0
    %s9 = scalar_lea.sflag [#allocation5], 1
    %10 = vsyncpa %s9, 0
    %11 = vsyncpa [#allocation6], 0
    %s12 = scalar_lea.sflag [#allocation6], 1
    %13 = vsyncpa %s12, 0
    loop: start=0, step=1, limit=4
    $region2: #{tpu_custom_call.1} parent=1 // loop_pre_header
      _
    $region3: #{tpu_custom_call.1} parent=1 // loop_header
      %s15 = sphi 0, %s19
      %p16 = scmp.ge.s32.totalorder %s15, 4
      %s25 = sphi 0, %s27
      %s28 = sphi 0, %s25
      %s29 = sphi 0, %s28
      %s45 = sphi 0, %s29
      %s51 = sphi 0, %s53
      %s54 = sphi 0, %s51
      %s55 = sphi 0, %s54
      %s71 = sphi 0, %s55
    $region4: #{tpu_custom_call.1} parent=1 // loop_header_branch
      %18 = sbr.rel (%p16) target = $region8
    $region5: #{tpu_custom_call.1} parent=1 // loop_body
      %s20 = ssub.s32 %s15, 1
      %s21 = ssub.s32 %s15, 2
      %s22 = sadd.s32 %s15, 1
      %s23 = ssub.s32 %s15, %s22
      %p24 = scmp.eq.s32.totalorder %s23, 0
      %s26 = sadd.s32 %s25, 1
      %s27 = scalar_select %p24, %s25, %s26
      %p30 = pneg %p24
      %p31 = scmp.eq.s32.totalorder %s15, 1
      %p32 = por %p30, %p31
      %p33 = scmp.ne.s32.totalorder %s25, %s28
      %p34 = scmp.eq.s32.totalorder %s15, 0
      %p35 = por %p33, %p34
      %p36 = scmp.ne.s32.totalorder %s25, %s28
      %p37 = scmp.eq.s32.totalorder %s20, 1
      %p38 = por %p36, %p37
      %p39 = scmp.ne.s32.totalorder %s28, %s29
      %p40 = scmp.eq.s32.totalorder %s20, 0
      %p41 = por %p39, %p40
      %p42 = scmp.ne.s32.totalorder %s28, %s29
      %p43 = scmp.eq.s32.totalorder %s21, 1
      %p44 = por %p42, %p43
      %p46 = scmp.ne.s32.totalorder %s29, %s45
      %p47 = scmp.eq.s32.totalorder %s21, 0
      %p48 = por %p46, %p47
      %s49 = ssub.s32 %s15, %s22
      %p50 = scmp.eq.s32.totalorder %s49, 0
      %s52 = sadd.s32 %s51, 1
      %s53 = scalar_select %p50, %s51, %s52
      %p56 = pneg %p50
      %p57 = scmp.eq.s32.totalorder %s15, 1
      %p58 = por %p56, %p57
      %p59 = scmp.ne.s32.totalorder %s51, %s54
      %p60 = scmp.eq.s32.totalorder %s15, 0
      %p61 = por %p59, %p60
      %p62 = scmp.ne.s32.totalorder %s51, %s54
      %p63 = scmp.eq.s32.totalorder %s20, 1
      %p64 = por %p62, %p63
      %p65 = scmp.ne.s32.totalorder %s54, %s55
      %p66 = scmp.eq.s32.totalorder %s20, 0
      %p67 = por %p65, %p66
      %p68 = scmp.ne.s32.totalorder %s54, %s55
      %p69 = scmp.eq.s32.totalorder %s21, 1
      %p70 = por %p68, %p69
      %p72 = scmp.ne.s32.totalorder %s55, %s71
      %p73 = scmp.eq.s32.totalorder %s21, 0
      %p74 = por %p72, %p73
      %p75 = scmp.le.s32.totalorder 1, %s15
      %p76 = scmp.lt.s32.totalorder %s15, 3
      %p77 = pnand %p75, %p76
      %p78 = pneg %p77
      // Predicated region
      $region9: #{tpu_custom_call.1} parent=5 // pred_check
        _
      $region10: #{tpu_custom_call.1} parent=5 // pred_check_branch
        %80 = sbr.rel (%p77) target = $region12
      $region11: #{tpu_custom_call.1} parent=5 // pred_region
        %s81 = ssub.s32 %s15, 1
      $region12: #{tpu_custom_call.1} parent=5 // pred_fallthru
        _
      %p82 = scmp.lt.s32.totalorder %s15, 2
      // Predicated region
      $region13: #{tpu_custom_call.1} parent=5 // pred_check
        %p83 = pneg %p82
      $region14: #{tpu_custom_call.1} parent=5 // pred_check_branch
        %85 = sbr.rel (%p83) target = $region16
      $region15: #{tpu_custom_call.1} parent=5 // pred_region
        // Predicated region
        $region17: #{tpu_custom_call.1} parent=15 // pred_check
          %p86 = pneg %p35
        $region18: #{tpu_custom_call.1} parent=15 // pred_check_branch
          %88 = sbr.rel (%p86) target = $region20
        $region19: #{tpu_custom_call.1} parent=15 // pred_region
          %s89 = sand.u32 %s25, 1
          %s90 = scalar_lea.sflag [#allocation5], %s89
          %s91 = sand.u32 %s25, 1
          %s92 = smul.addr %s91, 8
          %s93 = scalar_lea.vmem [#allocation4], %s92
          %s95 = ssub.s32 128, 128
          %96 = vsyncadd %s90, %s95
          %s97 = smul.addr %s15, 2
          %s98 = smul.addr %s97, 64
          %s99 = scalar_lea.hbm %s1, %s98
          %s101 = sshll.u32 %s93, 4
          %s102 = int_to_ptr.vmem [resolvable:$true] %s101
          %104 = dma.hbm_to_vmem [thread:$0]  %s99, 128, %s102, %s90
        $region20: #{tpu_custom_call.1} parent=15 // pred_fallthru
          _
      $region16: #{tpu_custom_call.1} parent=5 // pred_fallthru
        _
      %p105 = scmp.le.s32.totalorder 1, %s15
      %p106 = scmp.lt.s32.totalorder %s15, 3
      %p107 = pnand %p105, %p106
      %p108 = pneg %p107
      // Predicated region
      $region21: #{tpu_custom_call.1} parent=5 // pred_check
        _
      $region22: #{tpu_custom_call.1} parent=5 // pred_check_branch
        %110 = sbr.rel (%p107) target = $region24
      $region23: #{tpu_custom_call.1} parent=5 // pred_region
        %s111 = ssub.s32 %s15, 1
        %s112 = sand.u32 %s28, 1
        %s113 = scalar_lea.sflag [#allocation5], %s112
        %s114 = sand.u32 %s28, 1
        %s115 = smul.addr %s114, 8
        %s116 = scalar_lea.vmem [#allocation4], %s115
        // Predicated region
        $region25: #{tpu_custom_call.1} parent=23 // pred_check
          %p117 = pneg %p41
        $region26: #{tpu_custom_call.1} parent=23 // pred_check_branch
          %119 = sbr.rel (%p117) target = $region28
        $region27: #{tpu_custom_call.1} parent=23 // pred_region
          %120 = dma.done %s113, 128
        $region28: #{tpu_custom_call.1} parent=23 // pred_fallthru
          _
        %s121 = sand.u32 %s28, 1
        %s122 = scalar_lea.sflag [#allocation5], %s121
        %s123 = sand.u32 %s28, 1
        %s124 = smul.addr %s123, 8
        %s125 = scalar_lea.vmem [#allocation4], %s124
        %p126 = pneg %p41
        %p127 = pneg %p38
        %p128 = pneg %p67
        %p129 = pneg %p64
        %s130 = sand.u32 %s54, 1
        %s131 = scalar_lea.sflag [#allocation6], %s130
        %s132 = sand.u32 %s54, 1
        %s133 = smul.addr %s132, 8
        %s134 = scalar_lea.vmem [#allocation7], %s133
        %v136 = vld [vmem:[%s116] sm:$0xff]
        %v138 = vcombine.high %v136, %v136
        %v140 = vpack.c.bf16 %v136, %v136
        %v141 = vpack.c.bf16 %v138, %v138
        %142 = vmatprep.subr.bf16.mxu0 %v141
        %143 = vmatpush1.bf16.xpose.msra.mxu0 %v140
        %144 = vmatprep.subr.bf16.mxu0 0
        %145 = vmatpush1.bf16.xpose.msra.mxu0 0
        %146 = vmatprep.subr.bf16.mxu0 0
        %147 = vmatpush1.bf16.xpose.msra.mxu0 0
        %148 = vmatprep.subr.bf16.mxu0 0
        %149 = vmatpush1.bf16.xpose.msra.mxu0 0
        %150 = vmatprep.subr.bf16.mxu0 0
        %151 = vmatpush1.bf16.xpose.msra.mxu0 0
        %152 = vmatprep.subr.bf16.mxu0 0
        %153 = vmatpush1.bf16.xpose.msra.mxu0 0
        %154 = vmatprep.subr.bf16.mxu0 0
        %155 = vmatpush1.bf16.xpose.msra.mxu0 0
        %156 = vmatprep.subr.bf16.mxu0 0
        %157 = vmatpush1.bf16.xpose.msra.mxu0 0
        %158 = vmatprep.subr.bf16.mxu0 0
        %159 = vmatpush1.bf16.xpose.msra.mxu0 0
        %160 = vmatprep.subr.bf16.mxu0 0
        %161 = vmatpush1.bf16.xpose.msra.mxu0 0
        %162 = vmatprep.subr.bf16.mxu0 0
        %163 = vmatpush1.bf16.xpose.msra.mxu0 0
        %164 = vmatprep.subr.bf16.mxu0 0
        %165 = vmatpush1.bf16.xpose.msra.mxu0 0
        %166 = vmatprep.subr.bf16.mxu0 0
        %167 = vmatpush1.bf16.xpose.msra.mxu0 0
        %168 = vmatprep.subr.bf16.mxu0 0
        %169 = vmatpush1.bf16.xpose.msra.mxu0 0
        %170 = vmatprep.subr.bf16.mxu0 0
        %171 = vmatpush1.bf16.xpose.msra.mxu0 0
        %172 = vmatprep.subr.bf16.mxu0 0
        %173 = vmatpush1.bf16.xpose.msra.mxu0 0
        %174 = vmatprep.mubr.bf16.mxu0 %v141
        %175 = vmatmul.mubr.bf16.gmra.mrb[0].mxu0 %v140
        %v176 = vpop.f32.mrb[0].mxu0
        %v177 = vadd.f32 0.0, %v176
        %v178 = vpop.f32.mrb[0].mxu0
        %v179 = vpop.f32.mrb[0].mxu0
        %v180 = vpop.f32.mrb[0].mxu0
        %181 = vdwg.mxu0
        %vm182 = vcmask 27648
        %v183 = vsel %vm182, %v177, inf
        %184 = vmin.xlane.f32.xlu0 %v183
        %v185 = vpop.xlane.xlu0 %184
        %v186 = vsub.f32 %v185, %v177
        %v187 = vmul.f32 %v186, 1.442695
        %v188 = vpow.pop %v187
        %v189 = vsel %vm182, %v188, 0.0
        %190 = vadd.xlane.f32.xlu0 %v189
        %v191 = vpop.xlane.xlu0 %190
        %v192 = vrcp.pop %v191
        %v193 = vmul.f32 %v188, %v192
        %v194 = vpack.c.bf16 %v193, %v193
        %vm195 = vcmask 31744
        %v197 = vsel %vm195, %v194, 0
        %vm199 = vcmask 1041408
        %v201 = vsel %vm199, %v140, 0
        %v204 = vsel %vm199, %v141, 0
        %206 = vmatprep.subr.bf16.mxu0 %v204
        %207 = vmatpush1.bf16.msra.mxu0 %v201
        %208 = vmatprep.subr.bf16.mxu0 0
        %209 = vmatpush1.bf16.msra.mxu0 0
        %210 = vmatprep.subr.bf16.mxu0 0
        %211 = vmatpush1.bf16.msra.mxu0 0
        %212 = vmatprep.subr.bf16.mxu0 0
        %213 = vmatpush1.bf16.msra.mxu0 0
        %214 = vmatprep.subr.bf16.mxu0 0
        %215 = vmatpush1.bf16.msra.mxu0 0
        %216 = vmatprep.subr.bf16.mxu0 0
        %217 = vmatpush1.bf16.msra.mxu0 0
        %218 = vmatprep.subr.bf16.mxu0 0
        %219 = vmatpush1.bf16.msra.mxu0 0
        %220 = vmatprep.subr.bf16.mxu0 0
        %221 = vmatpush1.bf16.msra.mxu0 0
        %222 = vmatprep.subr.bf16.mxu0 0
        %223 = vmatpush1.bf16.msra.mxu0 0
        %224 = vmatprep.subr.bf16.mxu0 0
        %225 = vmatpush1.bf16.msra.mxu0 0
        %226 = vmatprep.subr.bf16.mxu0 0
        %227 = vmatpush1.bf16.msra.mxu0 0
        %228 = vmatprep.subr.bf16.mxu0 0
        %229 = vmatpush1.bf16.msra.mxu0 0
        %230 = vmatprep.subr.bf16.mxu0 0
        %231 = vmatpush1.bf16.msra.mxu0 0
        %232 = vmatprep.subr.bf16.mxu0 0
        %233 = vmatpush1.bf16.msra.mxu0 0
        %234 = vmatprep.subr.bf16.mxu0 0
        %235 = vmatpush1.bf16.msra.mxu0 0
        %236 = vmatprep.subr.bf16.mxu0 0
        %237 = vmatpush1.bf16.msra.mxu0 0
        %238 = vmatprep.mubr.bf16.mxu0 0
        %239 = vmatmul.mubr.bf16.gmra.mrb[0].mxu0 %v197
        %v240 = vpop.f32.mrb[0].mxu0
        %v241 = vadd.f32 0.0, %v240
        %v242 = vpop.f32.mrb[0].mxu0
        %v243 = vadd.f32 0.0, %v242
        %v244 = vpop.f32.mrb[0].mxu0
        %v245 = vpop.f32.mrb[0].mxu0
        %246 = vdwg.mxu0
        %s247 = sld [smem:[#allocation3]]
        %v248 = vstv %s247
        %v249 = vmul.f32 %v248, %v241
        %v250 = vmul.f32 %v248, %v243
        %v251 = vadd.f32 %v249, %v136
        %v252 = vadd.f32 %v250, %v138
        %v255 = vcombine.low %v251, %v252
        %257 = vst [vmem:[%s134] sm:$0xff] %v255
        %s258 = sand.u32 %s54, 1
        %s259 = scalar_lea.sflag [#allocation6], %s258
        %s260 = sand.u32 %s54, 1
        %s261 = smul.addr %s260, 8
        %s262 = scalar_lea.vmem [#allocation7], %s261
        // Predicated region
        $region29: #{tpu_custom_call.1} parent=23 // pred_check
          %p263 = pneg %p64
        $region30: #{tpu_custom_call.1} parent=23 // pred_check_branch
          %265 = sbr.rel (%p263) target = $region32
        $region31: #{tpu_custom_call.1} parent=23 // pred_region
          %s267 = ssub.s32 128, 128
          %268 = vsyncadd %s259, %s267
          %s269 = smul.addr %s20, 2
          %s270 = smul.addr %s269, 64
          %s271 = scalar_lea.hbm %s2, %s270
          %s273 = sshll.u32 %s262, 4
          %s274 = int_to_ptr.vmem [resolvable:$true] %s273
          %276 = dma.vmem_to_hbm [thread:$0]  %s274, 128, %s271, %s259
        $region32: #{tpu_custom_call.1} parent=23 // pred_fallthru
          _
      $region24: #{tpu_custom_call.1} parent=5 // pred_fallthru
        _
      %p277 = scmp.le.s32.totalorder 2, %s15
      // Predicated region
      $region33: #{tpu_custom_call.1} parent=5 // pred_check
        %p278 = pneg %p277
      $region34: #{tpu_custom_call.1} parent=5 // pred_check_branch
        %280 = sbr.rel (%p278) target = $region36
      $region35: #{tpu_custom_call.1} parent=5 // pred_region
        %s281 = ssub.s32 %s15, 2
        // Predicated region
        $region37: #{tpu_custom_call.1} parent=35 // pred_check
          %p282 = pneg %p70
        $region38: #{tpu_custom_call.1} parent=35 // pred_check_branch
          %284 = sbr.rel (%p282) target = $region40
        $region39: #{tpu_custom_call.1} parent=35 // pred_region
          %s285 = sand.u32 %s55, 1
          %s286 = scalar_lea.sflag [#allocation6], %s285
          %s287 = sand.u32 %s55, 1
          %s288 = smul.addr %s287, 8
          %s289 = scalar_lea.vmem [#allocation7], %s288
          %290 = dma.done %s286, 128
        $region40: #{tpu_custom_call.1} parent=35 // pred_fallthru
          _
      $region36: #{tpu_custom_call.1} parent=5 // pred_fallthru
        _
    $region6: #{tpu_custom_call.1} parent=1 // loop_footer
      %s19 = sadd.s32 1, %s15
    $region7: #{tpu_custom_call.1} parent=1 // loop_footer_branch
      %14 = sbr.rel target = $region3
    $region8: #{tpu_custom_call.1} parent=1 // loop_exit
      _
    %291 = vsyncpa [#allocation5], 1
    %s292 = scalar_lea.sflag [#allocation5], 1
    %293 = vsyncpa %s292, 1
    %294 = vsyncpa [#allocation6], 1
    %s295 = scalar_lea.sflag [#allocation6], 1
    %296 = vsyncpa %s295, 1

</llo_original>
